<compile_context>
chip_gen: v6e
topology: v6e:2x2x1
jax: 0.10.0
libtpu: 0.0.40
codegen_flags: <defaults>
</compile_context>

<pallas_src>
import functools

import jax
import jax.numpy as jnp
from jax.experimental import pallas as pl
from jax.experimental.pallas import tpu as pltpu

LANES = 128
SUBLANES = 8
TILE_R = 4096   # rows per grid step: 4096 * 128 * 4 B = 2 MiB per input block
NSPLIT = 2      # leading "parallel" grid axis (2 TensorCores on v7x)


def _rmse_partial_kernel(yhat_ref, y_ref, out_ref, *,
                         n_elems, tile_r, steps_per_core, needs_mask):
    c = pl.program_id(0)   # core-split axis ("parallel")
    j = pl.program_id(1)   # reduction steps within the split ("arbitrary")

    # The output block index is constant along j, so out_ref is VMEM-resident
    # across the whole reduction: use it directly as the accumulator.
    @pl.when(j == 0)
    def _init():
        out_ref[...] = jnp.zeros_like(out_ref)

    d = yhat_ref[...].astype(jnp.float32) - y_ref[...].astype(jnp.float32)
    sq = d * d

    if needs_mask:
        # Zero out anything past the true element count: zero padding, garbage
        # rows from the partial (OOB) last block, and fully-dead duplicate
        # steps on the second core split.  (Global index fits int32 for any
        # realistic loss tensor, < 2^31 elements.)  This is pure VPU filler
        # hidden under the HBM DMA stream.
        row_ids = jax.lax.broadcasted_iota(jnp.int32, (tile_r, LANES), 0)
        lane_ids = jax.lax.broadcasted_iota(jnp.int32, (tile_r, LANES), 1)
        blk = c * steps_per_core + j
        global_idx = (blk * tile_r + row_ids) * LANES + lane_ids
        sq = jnp.where(global_idx < n_elems, sq, jnp.float32(0.0))

    # Fold rows onto the (8, 128) vreg-shaped accumulator: the reshape splits
    # the sublane axis on native (8,128) tile boundaries (layout-preserving),
    # and the axis-0 sum is pure VPU vreg adds that hide under the DMA stream.
    out_ref[...] += jnp.sum(sq.reshape(-1, SUBLANES, LANES),
                            axis=0).reshape(1, SUBLANES, LANES)


def rmse_loss(yhat, y):
    assert yhat.shape == y.shape, "RMSELoss expects matching shapes"
    n_elems = yhat.size

    flat_yhat = yhat.reshape(-1)
    flat_y = y.reshape(-1)

    # Pad only when n_elems is not a multiple of 8*128 (pad < 1024 elements);
    # padded elements are zeros and are masked in-kernel anyway.
    # (For very large non-aligned inputs one could pad only the ragged tail
    #  chunk instead of copying the whole array; aligned inputs pay nothing.)
    sub = SUBLANES * LANES
    padded = pl.cdiv(n_elems, sub) * sub
    pad = padded - n_elems
    if pad:
        flat_yhat = jnp.pad(flat_yhat, (0, pad))
        flat_y = jnp.pad(flat_y, (0, pad))

    rows = padded // LANES                       # multiple of 8
    tile_r = min(TILE_R, rows)                   # multiple of 8
    steps_total = pl.cdiv(rows, tile_r)          # real blocks in the slab
    # Only split across TensorCores when there is more than one step; small
    # inputs then run a single clean block with no dead steps / no masking.
    nsplit = NSPLIT if steps_total >= NSPLIT else 1
    steps_per_core = pl.cdiv(steps_total, nsplit)
    covered = nsplit * steps_per_core * tile_r * LANES
    needs_mask = covered != n_elems              # exact cover -> skip masking

    def in_index(c, j):
        b = c * steps_per_core + j
        # Dead steps (past the last real block) re-read the last valid block;
        # their contribution is zeroed by the in-kernel mask.
        return (jnp.minimum(b, steps_total - 1), 0)

    kernel = functools.partial(
        _rmse_partial_kernel,
        n_elems=n_elems,
        tile_r=tile_r,
        steps_per_core=steps_per_core,
        needs_mask=needs_mask,
    )

    partials = pl.pallas_call(
        kernel,
        out_shape=jax.ShapeDtypeStruct((nsplit, SUBLANES, LANES), jnp.float32),
        grid_spec=pltpu.PrefetchScalarGridSpec(
            num_scalar_prefetch=0,
            grid=(nsplit, steps_per_core),
            in_specs=[
                pl.BlockSpec((tile_r, LANES), in_index),
                pl.BlockSpec((tile_r, LANES), in_index),
            ],
            out_specs=pl.BlockSpec((1, SUBLANES, LANES),
                                   lambda c, j: (c, 0, 0)),
        ),
        compiler_params=pltpu.CompilerParams(
            dimension_semantics=("parallel", "arbitrary"),
        ),
    )(flat_yhat.reshape(rows, LANES), flat_y.reshape(rows, LANES))

    # Tiny final combine (nsplit*8*128 partial sums) + sqrt.
    return jnp.sqrt(jnp.sum(partials) / jnp.float32(n_elems))


if __name__ == "__main__":
    key = jax.random.PRNGKey(0)
    k1, k2 = jax.random.split(key)

    # Small shape consistent with a spectral-regression target: (B, C, H, W).
    shape = (2, 4, 16, 16)
    yhat = jax.random.normal(k1, shape, dtype=jnp.float32)
    y = jax.random.normal(k2, shape, dtype=jnp.float32)

    loss = rmse_loss(yhat, y)
    jax.block_until_ready(loss)
    ref = jnp.sqrt(jnp.mean((yhat - y) ** 2))
    assert jnp.allclose(loss, ref, rtol=1e-5, atol=1e-6), (loss, ref)

    # Extra sanity check: odd, non-1024-aligned size exercising the pad path,
    # the ragged last block, multi-step accumulation, the two-way core split
    # and dead-step masking.
    k3, k4 = jax.random.split(k2)
    shape2 = (1025, 517)
    yhat2 = jax.random.normal(k3, shape2, dtype=jnp.float32)
    y2 = jax.random.normal(k4, shape2, dtype=jnp.float32)
    loss2 = rmse_loss(yhat2, y2)
    jax.block_until_ready(loss2)
    ref2 = jnp.sqrt(jnp.mean((yhat2 - y2) ** 2))
    assert jnp.allclose(loss2, ref2, rtol=1e-5, atol=1e-6), (loss2, ref2)

    print("KERNEL_OK")
</pallas_src>

<mosaic_0001>
module attributes {stable_mosaic.version = 11 : i64} {
  func.func @_rmse_partial_kernel(%arg0: i32, %arg1: i32, %arg2: memref<16x128xf32, #tpu.memory_space<vmem>>, %arg3: memref<16x128xf32, #tpu.memory_space<vmem>>, %arg4: memref<1x8x128xf32, #tpu.memory_space<vmem>>) attributes {dimension_semantics = [#tpu.dimension_semantics<parallel>, #tpu.dimension_semantics<arbitrary>], iteration_bounds = array<i64: 1, 1>, scalar_prefetch = 0 : i64, scratch_operands = 0 : i64, tpu.core_type = #tpu.core_type<tc>, window_params = [{transform_indices = @transform_0, window_bounds = array<i64: 16, 128>}, {transform_indices = @transform_1, window_bounds = array<i64: 16, 128>}, {transform_indices = @transform_2, window_bounds = array<i64: 1, 8, 128>}]} {
    %c0_i32 = arith.constant 0 : i32
    %0 = arith.cmpi eq, %arg1, %c0_i32 : i32
    %1 = arith.extui %0 : i1 to i32
    %c0_i32_0 = arith.constant 0 : i32
    %2 = arith.cmpi ne, %1, %c0_i32_0 : i32
    scf.if %2 {
      %cst_10 = arith.constant 0.000000e+00 : f32
      %13 = vector.broadcast %cst_10 : f32 to vector<1x8x128xf32>
      %c0_11 = arith.constant 0 : index
      %c0_12 = arith.constant 0 : index
      %c0_13 = arith.constant 0 : index
      %14 = vector.load %arg4[%c0_11, %c0_12, %c0_13] : memref<1x8x128xf32, #tpu.memory_space<vmem>>, vector<1x8x128xf32>
      tpu.vector_store %arg4[%c0_11, %c0_12, %c0_13], %13 {strides = array<i32>} : memref<1x8x128xf32, #tpu.memory_space<vmem>>, vector<1x8x128xf32>,
    } else {
    }
    %c0 = arith.constant 0 : index
    %c0_1 = arith.constant 0 : index
    %3 = vector.load %arg2[%c0, %c0_1] : memref<16x128xf32, #tpu.memory_space<vmem>>, vector<16x128xf32>
    %c0_2 = arith.constant 0 : index
    %c0_3 = arith.constant 0 : index
    %4 = vector.load %arg3[%c0_2, %c0_3] : memref<16x128xf32, #tpu.memory_space<vmem>>, vector<16x128xf32>
    %5 = arith.subf %3, %4 : vector<16x128xf32>
    %6 = arith.mulf %5, %5 : vector<16x128xf32>
    %c0_4 = arith.constant 0 : index
    %c0_5 = arith.constant 0 : index
    %c0_6 = arith.constant 0 : index
    %7 = vector.load %arg4[%c0_4, %c0_5, %c0_6] : memref<1x8x128xf32, #tpu.memory_space<vmem>>, vector<1x8x128xf32>
    %8 = vector.shape_cast %6 : vector<16x128xf32> to vector<2x8x128xf32>
    %cst = arith.constant dense<0.000000e+00> : vector<8x128xf32>
    %9 = vector.multi_reduction <add>, %8, %cst [0] : vector<2x8x128xf32> to vector<8x128xf32>
    %10 = vector.shape_cast %9 : vector<8x128xf32> to vector<1x8x128xf32>
    %11 = arith.addf %7, %10 : vector<1x8x128xf32>
    %c0_7 = arith.constant 0 : index
    %c0_8 = arith.constant 0 : index
    %c0_9 = arith.constant 0 : index
    %12 = vector.load %arg4[%c0_7, %c0_8, %c0_9] : memref<1x8x128xf32, #tpu.memory_space<vmem>>, vector<1x8x128xf32>
    tpu.vector_store %arg4[%c0_7, %c0_8, %c0_9], %11 {strides = array<i32>} : memref<1x8x128xf32, #tpu.memory_space<vmem>>, vector<1x8x128xf32>,
    return
  }
  func.func @transform_0(%arg0: i32, %arg1: i32) -> (i32, i32) {
    %c1_i32 = arith.constant 1 : i32
    %0 = arith.muli %arg0, %c1_i32 : i32
    %1 = arith.addi %0, %arg1 : i32
    %c0_i32 = arith.constant 0 : i32
    %2 = arith.minsi %1, %c0_i32 : i32
    %c0_i32_0 = arith.constant 0 : i32
    %c0_i32_1 = arith.constant 0 : i32
    return %2, %c0_i32_0 : i32, i32
  }
  func.func @transform_1(%arg0: i32, %arg1: i32) -> (i32, i32) {
    %c1_i32 = arith.constant 1 : i32
    %0 = arith.muli %arg0, %c1_i32 : i32
    %1 = arith.addi %0, %arg1 : i32
    %c0_i32 = arith.constant 0 : i32
    %2 = arith.minsi %1, %c0_i32 : i32
    %c0_i32_0 = arith.constant 0 : i32
    %c0_i32_1 = arith.constant 0 : i32
    return %2, %c0_i32_0 : i32, i32
  }
  func.func @transform_2(%arg0: i32, %arg1: i32) -> (i32, i32, i32) {
    %c0_i32 = arith.constant 0 : i32
    %c0_i32_0 = arith.constant 0 : i32
    %c0_i32_1 = arith.constant 0 : i32
    return %arg0, %c0_i32, %c0_i32_0 : i32, i32, i32
  }
}

</mosaic_0001>

<llo_original>
// kernel: tpu_custom_call.1
$region0: #{tpu_custom_call.1}
  #allocation0 [shape = 'u32[]', space=smem, size = 0x4, offset = 0x4, fixed_abs, tag = 'smem constant byte address 0x4 - core index']
  #allocation1 [shape = 'u32[144,128]{1,0:T(1,128)}', space=vmem, size = 0x12000, scoped, tag = 'internal scratch']
  %s0 = inlined_call_operand.hbm [shape: f32[16,128], index: 0, kind: input, shape index: {}]
  %s1 = inlined_call_operand.hbm [shape: f32[16,128], index: 1, kind: input, shape index: {}]
  %s2 = inlined_call_operand.hbm [shape: f32[1,8,128], index: 2, kind: output, shape index: {}]
  %s3 = sld [smem:[#allocation0]]
  $region30: #{tpu_custom_call.1} parent=0
    _
  %s5 = ssub.s32 1, %s3
  %s6 = scalar_select 0, %s5, %s3
  $region1: #{tpu_custom_call.1} parent=0
    #allocation2 [shape = 'u8[8192]{0}', space=vmem, size = 0x2000, scoped, tag = 'input window, operand 0, single buffered']
    #allocation3 [shape = 's32[1]{0}', space=sflag, size = 0x4, scoped, tag = 'scoped memory for tpu_custom_call.1']
    #allocation4 [shape = 's32[1]{0}', space=sflag, size = 0x4, scoped, tag = 'scoped memory for tpu_custom_call.1']
    #allocation5 [shape = 'u8[8192]{0}', space=vmem, size = 0x2000, scoped, tag = 'input window, operand 1, single buffered']
    #allocation6 [shape = 's32[1]{0}', space=sflag, size = 0x4, scoped, tag = 'scoped memory for tpu_custom_call.1']
    #allocation7 [shape = 'u8[4096]{0}', space=vmem, size = 0x1000, scoped, tag = 'output window, operand 0, single buffered']
    %7 = vsyncpa [#allocation3], 0
    %8 = vsyncpa [#allocation6], 0
    %9 = vsyncpa [#allocation4], 0
    // Predicated region
    $region2: #{tpu_custom_call.1} parent=1 // pred_check
      _
    $region3: #{tpu_custom_call.1} parent=1 // pred_check_branch
      %11 = sbr.rel (0) target = $region5
    $region4: #{tpu_custom_call.1} parent=1 // pred_region
      %s12 = sadd.s32 0, 0
      %p13 = scmp.lt.s32.totalorder %s12, 0
      %s14 = scalar_select %p13, %s12, 0
      %s15 = smul.u32 2, %s14
      %s17 = ssub.s32 256, 256
      %18 = vsyncadd [#allocation3], %s17
      %s19 = smul.addr %s15, 128
      %s20 = scalar_lea.hbm %s0, %s19
      %s21 = sshll.u32 [#allocation2], 4
      %s22 = int_to_ptr.vmem [resolvable:$true] %s21
      %27 = dma.hbm_to_vmem [thread:$0]  %s20, 256, %s22, [#allocation3], 128, 128, 8
    $region5: #{tpu_custom_call.1} parent=1 // pred_fallthru
      _
    // Predicated region
    $region6: #{tpu_custom_call.1} parent=1 // pred_check
      _
    $region7: #{tpu_custom_call.1} parent=1 // pred_check_branch
      %29 = sbr.rel (0) target = $region9
    $region8: #{tpu_custom_call.1} parent=1 // pred_region
      %s30 = sadd.s32 0, 0
      %p31 = scmp.lt.s32.totalorder %s30, 0
      %s32 = scalar_select %p31, %s30, 0
      %s33 = smul.u32 2, %s32
      %s35 = ssub.s32 256, 256
      %36 = vsyncadd [#allocation6], %s35
      %s37 = smul.addr %s33, 128
      %s38 = scalar_lea.hbm %s1, %s37
      %s39 = sshll.u32 [#allocation5], 4
      %s40 = int_to_ptr.vmem [resolvable:$true] %s39
      %45 = dma.hbm_to_vmem [thread:$0]  %s38, 256, %s40, [#allocation6], 128, 128, 8
    $region9: #{tpu_custom_call.1} parent=1 // pred_fallthru
      _
    // Predicated region
    $region10: #{tpu_custom_call.1} parent=1 // pred_check
      _
    $region11: #{tpu_custom_call.1} parent=1 // pred_check_branch
      %47 = sbr.rel (0) target = $region13
    $region12: #{tpu_custom_call.1} parent=1 // pred_region
      %48 = dma.done [#allocation3], 256
    $region13: #{tpu_custom_call.1} parent=1 // pred_fallthru
      _
    // Predicated region
    $region14: #{tpu_custom_call.1} parent=1 // pred_check
      _
    $region15: #{tpu_custom_call.1} parent=1 // pred_check_branch
      %50 = sbr.rel (0) target = $region17
    $region16: #{tpu_custom_call.1} parent=1 // pred_region
      %51 = dma.done [#allocation6], 256
    $region17: #{tpu_custom_call.1} parent=1 // pred_fallthru
      _
    %s52 = sadd.s32 0, 0
    %p53 = scmp.lt.s32.totalorder %s52, 0
    %s54 = scalar_select %p53, %s52, 0
    %s55 = smul.u32 2, %s54
    %s56 = sadd.s32 0, 0
    %p57 = scmp.lt.s32.totalorder %s56, 0
    %s58 = scalar_select %p57, %s56, 0
    %s59 = smul.u32 2, %s58
    %p60 = scmp.eq.s32.totalorder 0, 0
    // Predicated region
    $region18: #{tpu_custom_call.1} parent=1 // pred_check
      %p61 = pneg %p60
    $region19: #{tpu_custom_call.1} parent=1 // pred_check_branch
      %63 = sbr.rel (%p61) target = $region21
    $region20: #{tpu_custom_call.1} parent=1 // pred_region
      %64 = vst [vmem:[#allocation7] sm:$0xff] 0.0
    $region21: #{tpu_custom_call.1} parent=1 // pred_fallthru
      _
    %v65 = vld [vmem:[#allocation2] sm:$0xff]
    %v66 = vld [vmem:[#allocation2 + $0x8] sm:$0xff]
    %v67 = vld [vmem:[#allocation5] sm:$0xff]
    %v68 = vld [vmem:[#allocation5 + $0x8] sm:$0xff]
    %v69 = vsub.f32 %v65, %v67
    %v70 = vsub.f32 %v66, %v68
    %v71 = vmul.f32 %v69, %v69
    %v72 = vmul.f32 %v70, %v70
    %v73 = vld [vmem:[#allocation7] sm:$0xff]
    %v74 = vadd.f32 %v71, %v72
    %v75 = vadd.f32 %v73, %v74
    %76 = vst [vmem:[#allocation7] sm:$0xff] %v75
    // Predicated region
    $region22: #{tpu_custom_call.1} parent=1 // pred_check
      _
    $region23: #{tpu_custom_call.1} parent=1 // pred_check_branch
      %78 = sbr.rel (0) target = $region25
    $region24: #{tpu_custom_call.1} parent=1 // pred_region
      %s80 = ssub.s32 128, 128
      %81 = vsyncadd [#allocation4], %s80
      %s83 = sshll.u32 [#allocation7], 4
      %s84 = int_to_ptr.vmem [resolvable:$true] %s83
      %86 = dma.vmem_to_hbm [thread:$0]  %s84, 128, %s2, [#allocation4]
    $region25: #{tpu_custom_call.1} parent=1 // pred_fallthru
      _
    // Predicated region
    $region26: #{tpu_custom_call.1} parent=1 // pred_check
      _
    $region27: #{tpu_custom_call.1} parent=1 // pred_check_branch
      %88 = sbr.rel (0) target = $region29
    $region28: #{tpu_custom_call.1} parent=1 // pred_region
      %89 = dma.done [#allocation4], 128
    $region29: #{tpu_custom_call.1} parent=1 // pred_fallthru
      _
    %90 = vsyncpa [#allocation3], 1
    %91 = vsyncpa [#allocation6], 1
    %92 = vsyncpa [#allocation4], 1

</llo_original>
